<compile_context>
chip_gen: v7x
topology: tpu7x:2x2x1
jax: 0.10.0
libtpu: 0.0.40
codegen_flags: <defaults>
</compile_context>

<pallas_src>
import functools

import jax
import jax.numpy as jnp
from jax.experimental import pallas as pl
from jax.experimental.pallas import tpu as pltpu


def _channel_attn_kernel(x_ref, w1_ref, b1_ref, w2_ref, b2_ref, out_ref,
                         acc_ref, *, inv_hw, tile_hw, last_tile_valid):
    # x_ref:  (BN, C, THW)  current batch-row block / spatial tile
    # w1_ref: (C, mid)      conv1 weight, transposed
    # b1_ref: (1, mid)
    # w2_ref: (mid, C)      conv2 weight, transposed
    # b2_ref: (1, C)
    # out_ref:(BN, C)       resident across the HW grid axis
    # acc_ref:(BN, C) f32   VMEM scratch accumulator for partial spatial sums
    hw_idx = pl.program_id(1)
    n_hw = pl.num_programs(1)

    @pl.when(hw_idx == 0)
    def _():
        acc_ref[...] = jnp.zeros_like(acc_ref)

    x = x_ref[...].astype(jnp.float32)                     # (BN, C, THW)

    if last_tile_valid == tile_hw:
        # Every HW tile is full -> plain partial spatial sum (pure VPU adds).
        acc_ref[...] += jnp.sum(x, axis=-1)
    else:
        # Trailing HW tile is ragged (no physical padding): mask OOB lanes
        # with a STATIC iota compare, only on the last tile.
        @pl.when(hw_idx < n_hw - 1)
        def _():
            acc_ref[...] += jnp.sum(x, axis=-1)

        @pl.when(hw_idx == n_hw - 1)
        def _():
            lane = jax.lax.broadcasted_iota(jnp.int32, x.shape, dimension=2)
            acc_ref[...] += jnp.sum(
                jnp.where(lane < last_tile_valid, x, 0.0), axis=-1)

    @pl.when(hw_idx == n_hw - 1)
    def _():
        pooled = acc_ref[...] * inv_hw                                    # avg pool
        h = jnp.dot(pooled, w1_ref[...],
                    preferred_element_type=jnp.float32) + b1_ref[...]     # (BN, mid)
        h = jnp.maximum(h, 0.0)                                           # ReLU
        y = jnp.dot(h, w2_ref[...],
                    preferred_element_type=jnp.float32) + b2_ref[...]     # (BN, C)
        out_ref[...] = jax.nn.sigmoid(y).astype(out_ref.dtype)


def _vmem_capacity_bytes():
    try:
        return int(pltpu.get_tpu_info().vmem_capacity_bytes)
    except Exception:
        return 64 << 20            # conservative: v7x has the smallest VMEM/core


def channel_attn(x, w1, b1, w2, b2, *, bn=None, thw=None):
    """x: (N, C, H, W) NCHW (matching the PyTorch module).

    w1: (mid, C)  -- conv1.weight.squeeze(-1,-2)
    b1: (mid,)
    w2: (C, mid)  -- conv2.weight.squeeze(-1,-2)
    b2: (C,)
    Returns: (N, C, 1, 1), same dtype as x.
    """
    N, C, H, W = x.shape
    mid = w1.shape[0]
    HW = H * W
    itemsize = jnp.dtype(x.dtype).itemsize

    # ---- Generation-aware VMEM budgeting ------------------------------------
    vmem_cap = _vmem_capacity_bytes()          # 64 MiB (v7x) / 128 MiB (v5e/v6e)
    w_bytes = (C * mid * 2 + mid + C) * 4      # fp32 weights + biases in VMEM
    # Total budget for the double-buffered x block (both buffers combined):
    # ~44 MiB on v7x, 56 MiB on v5e/v6e; never below 16 MiB.
    x_budget = max(16 << 20, min(56 << 20, vmem_cap - (16 << 20) - 2 * w_bytes))

    # ---- Spatial (HW) tiling: full extent when it fits, else 128-lane tiles.
    THW_MAX = 2048
    if thw is None:
        thw = HW if HW <= THW_MAX else THW_MAX
        # Co-tune with the bn=8 floor so large C can never blow the budget.
        if 2 * 8 * C * thw * itemsize > x_budget:
            thw_fit = (x_budget // (2 * 8 * C * itemsize)) // 128 * 128
            thw = max(128, min(thw, thw_fit))
            if thw >= HW:
                thw = HW
    if thw != HW:
        assert thw % 128 == 0, "HW tile must be a multiple of 128 lanes (or == HW)"
    n_hw = -(-HW // thw)
    last_tile_valid = HW - (n_hw - 1) * thw    # valid lanes in the last HW tile

    # ---- Batch-row blocking (ragged trailing block, no padding) -------------
    if bn is None:
        bn = x_budget // (2 * C * thw * itemsize)
        bn = max(8, min(128, (bn // 8) * 8))
        if N <= 8:
            bn = N                              # single block == full batch
        else:
            bn = min(bn, -(-N // 8) * 8)        # don't oversize tiny batches
            # v7x has 2 TensorCores: keep >= 2 steps on the parallel axis.
            bn = min(bn, max(8, (N // 2) // 8 * 8))
    assert bn == N or bn % 8 == 0
    n_b = -(-N // bn)

    # No jnp.pad: OOB batch rows are masked on store by Pallas; OOB HW lanes
    # are masked in-kernel.  reshape of contiguous NCHW is free.
    x_flat = x.reshape(N, C, HW)

    w1_t = jnp.asarray(w1).T.astype(jnp.float32)    # (C, mid)
    w2_t = jnp.asarray(w2).T.astype(jnp.float32)    # (mid, C)
    b1_2d = jnp.asarray(b1).reshape(1, mid).astype(jnp.float32)
    b2_2d = jnp.asarray(b2).reshape(1, C).astype(jnp.float32)

    x_block_bytes = 2 * bn * C * thw * itemsize     # double-buffered x tile
    vmem_limit = min(vmem_cap - (8 << 20),          # hard cap below physical VMEM
                     max(32 << 20, x_block_bytes + 2 * w_bytes + (8 << 20)))

    kernel = functools.partial(_channel_attn_kernel, inv_hw=1.0 / HW,
                               tile_hw=thw, last_tile_valid=last_tile_valid)

    out = pl.pallas_call(
        kernel,
        out_shape=jax.ShapeDtypeStruct((N, C), x.dtype),
        grid_spec=pltpu.PrefetchScalarGridSpec(
            num_scalar_prefetch=0,
            grid=(n_b, n_hw),
            in_specs=[
                pl.BlockSpec((bn, C, thw), lambda i, j: (i, 0, j)),
                pl.BlockSpec((C, mid), lambda i, j: (0, 0)),
                pl.BlockSpec((1, mid), lambda i, j: (0, 0)),
                pl.BlockSpec((mid, C), lambda i, j: (0, 0)),
                pl.BlockSpec((1, C), lambda i, j: (0, 0)),
            ],
            out_specs=pl.BlockSpec((bn, C), lambda i, j: (i, 0)),
            scratch_shapes=[pltpu.VMEM((bn, C), jnp.float32)],
        ),
        compiler_params=pltpu.CompilerParams(
            dimension_semantics=("parallel", "arbitrary"),
            vmem_limit_bytes=int(vmem_limit),
        ),
    )(x_flat, w1_t, b1_2d, w2_t, b2_2d)

    return out.reshape(N, C, 1, 1)


def reference(x, w1, b1, w2, b2):
    pooled = jnp.mean(x, axis=(2, 3))                     # (N, C)
    h = jnp.maximum(pooled @ w1.T + b1, 0.0)              # (N, mid)
    y = jax.nn.sigmoid(h @ w2.T + b2)                     # (N, C)
    return y.reshape(x.shape[0], x.shape[1], 1, 1)


if __name__ == "__main__":
    key = jax.random.PRNGKey(0)
    reduction_rate = 16

    # --- Test 1: small module-consistent shapes, single HW tile, single block ---
    N, C, H, W = 2, 32, 8, 8
    mid = C // reduction_rate
    kx, kw1, kb1, kw2, kb2 = jax.random.split(key, 5)
    x = jax.random.normal(kx, (N, C, H, W), dtype=jnp.float32)
    # conv1: Conv2d(C, mid, 1) -> weight (mid, C, 1, 1), bias (mid,)
    w1 = jax.random.normal(kw1, (mid, C), dtype=jnp.float32) * 0.1
    b1 = jax.random.normal(kb1, (mid,), dtype=jnp.float32) * 0.1
    # conv2: Conv2d(mid, C, 1) -> weight (C, mid, 1, 1), bias (C,)
    w2 = jax.random.normal(kw2, (C, mid), dtype=jnp.float32) * 0.1
    b2 = jax.random.normal(kb2, (C,), dtype=jnp.float32) * 0.1

    out = jax.block_until_ready(channel_attn(x, w1, b1, w2, b2))
    ref = reference(x, w1, b1, w2, b2)
    assert out.shape == (N, C, 1, 1)
    assert jnp.allclose(out, ref, atol=1e-5, rtol=1e-5), "mismatch vs reference (test 1)"

    # --- Test 2: ragged (masked) trailing HW tile, N not a multiple of 8 ---
    N2, C2, H2, W2 = 3, 32, 18, 18       # HW=324 with thw=128 -> tiles 128/128/68
    mid2 = C2 // reduction_rate
    k2 = jax.random.split(key, 6)
    x2 = jax.random.normal(k2[0], (N2, C2, H2, W2), dtype=jnp.float32)
    w1b = jax.random.normal(k2[1], (mid2, C2), dtype=jnp.float32) * 0.1
    b1b = jax.random.normal(k2[2], (mid2,), dtype=jnp.float32) * 0.1
    w2b = jax.random.normal(k2[3], (C2, mid2), dtype=jnp.float32) * 0.1
    b2b = jax.random.normal(k2[4], (C2,), dtype=jnp.float32) * 0.1

    out2 = jax.block_until_ready(channel_attn(x2, w1b, b1b, w2b, b2b, thw=128))
    ref2 = reference(x2, w1b, b1b, w2b, b2b)
    assert out2.shape == (N2, C2, 1, 1)
    assert jnp.allclose(out2, ref2, atol=1e-5, rtol=1e-5), "mismatch vs reference (test 2)"

    # --- Test 3: ragged trailing BATCH block (N=10, bn=8 -> 2 blocks, no pad) ---
    N3, C3, H3, W3 = 10, 32, 8, 8
    mid3 = C3 // reduction_rate
    k3 = jax.random.split(key, 11)
    x3 = jax.random.normal(k3[0], (N3, C3, H3, W3), dtype=jnp.float32)
    w1c = jax.random.normal(k3[1], (mid3, C3), dtype=jnp.float32) * 0.1
    b1c = jax.random.normal(k3[2], (mid3,), dtype=jnp.float32) * 0.1
    w2c = jax.random.normal(k3[3], (C3, mid3), dtype=jnp.float32) * 0.1
    b2c = jax.random.normal(k3[4], (C3,), dtype=jnp.float32) * 0.1

    out3 = jax.block_until_ready(channel_attn(x3, w1c, b1c, w2c, b2c))
    ref3 = reference(x3, w1c, b1c, w2c, b2c)
    assert out3.shape == (N3, C3, 1, 1)
    assert jnp.allclose(out3, ref3, atol=1e-5, rtol=1e-5), "mismatch vs reference (test 3)"

    print("KERNEL_OK")
</pallas_src>

<mosaic_0001>
module attributes {stable_mosaic.version = 11 : i64} {
  func.func @_channel_attn_kernel(%arg0: i32, %arg1: i32, %arg2: memref<2x32x64xf32, #tpu.memory_space<vmem>>, %arg3: memref<32x2xf32, #tpu.memory_space<vmem>>, %arg4: memref<1x2xf32, #tpu.memory_space<vmem>>, %arg5: memref<2x32xf32, #tpu.memory_space<vmem>>, %arg6: memref<1x32xf32, #tpu.memory_space<vmem>>, %arg7: memref<2x32xf32, #tpu.memory_space<vmem>>, %arg8: memref<2x32xf32, #tpu.memory_space<vmem>>) attributes {dimension_semantics = [#tpu.dimension_semantics<parallel>, #tpu.dimension_semantics<arbitrary>], iteration_bounds = array<i64: 1, 1>, scalar_prefetch = 0 : i64, scratch_operands = 1 : i64, tpu.core_type = #tpu.core_type<tc>, window_params = [{transform_indices = @transform_0, window_bounds = array<i64: 2, 32, 64>}, {pipeline_mode = #tpu.pipeline_mode<synchronous>, transform_indices = @transform_1, window_bounds = array<i64: 32, 2>}, {pipeline_mode = #tpu.pipeline_mode<synchronous>, transform_indices = @transform_2, window_bounds = array<i64: 1, 2>}, {pipeline_mode = #tpu.pipeline_mode<synchronous>, transform_indices = @transform_3, window_bounds = array<i64: 2, 32>}, {pipeline_mode = #tpu.pipeline_mode<synchronous>, transform_indices = @transform_4, window_bounds = array<i64: 1, 32>}, {transform_indices = @transform_5, window_bounds = array<i64: 2, 32>}]} {
    %c0_i32 = arith.constant 0 : i32
    %0 = arith.cmpi eq, %arg1, %c0_i32 : i32
    %1 = arith.extui %0 : i1 to i32
    %c0_i32_0 = arith.constant 0 : i32
    %2 = arith.cmpi ne, %1, %c0_i32_0 : i32
    scf.if %2 {
      %cst_9 = arith.constant 0.000000e+00 : f32
      %11 = vector.broadcast %cst_9 : f32 to vector<2x32xf32>
      %c0_10 = arith.constant 0 : index
      %c0_11 = arith.constant 0 : index
      %12 = vector.load %arg8[%c0_10, %c0_11] : memref<2x32xf32, #tpu.memory_space<vmem>>, vector<2x32xf32>
      tpu.vector_store %arg8[%c0_10, %c0_11], %11 {strides = array<i32>} : memref<2x32xf32, #tpu.memory_space<vmem>>, vector<2x32xf32>,
    } else {
    }
    %c0 = arith.constant 0 : index
    %c0_1 = arith.constant 0 : index
    %c0_2 = arith.constant 0 : index
    %3 = vector.load %arg2[%c0, %c0_1, %c0_2] : memref<2x32x64xf32, #tpu.memory_space<vmem>>, vector<2x32x64xf32>
    %c0_3 = arith.constant 0 : index
    %c0_4 = arith.constant 0 : index
    %4 = vector.load %arg8[%c0_3, %c0_4] : memref<2x32xf32, #tpu.memory_space<vmem>>, vector<2x32xf32>
    %cst = arith.constant dense<0.000000e+00> : vector<2x32xf32>
    %5 = vector.multi_reduction <add>, %3, %cst [2] : vector<2x32x64xf32> to vector<2x32xf32>
    %6 = arith.addf %4, %5 : vector<2x32xf32>
    %c0_5 = arith.constant 0 : index
    %c0_6 = arith.constant 0 : index
    %7 = vector.load %arg8[%c0_5, %c0_6] : memref<2x32xf32, #tpu.memory_space<vmem>>, vector<2x32xf32>
    tpu.vector_store %arg8[%c0_5, %c0_6], %6 {strides = array<i32>} : memref<2x32xf32, #tpu.memory_space<vmem>>, vector<2x32xf32>,
    %c0_i32_7 = arith.constant 0 : i32
    %8 = arith.cmpi eq, %arg1, %c0_i32_7 : i32
    %9 = arith.extui %8 : i1 to i32
    %c0_i32_8 = arith.constant 0 : i32
    %10 = arith.cmpi ne, %9, %c0_i32_8 : i32
    scf.if %10 {
      %c0_9 = arith.constant 0 : index
      %c0_10 = arith.constant 0 : index
      %11 = vector.load %arg8[%c0_9, %c0_10] : memref<2x32xf32, #tpu.memory_space<vmem>>, vector<2x32xf32>
      %cst_11 = arith.constant 1.562500e-02 : f32
      %12 = vector.broadcast %cst_11 : f32 to vector<2x32xf32>
      %13 = arith.mulf %11, %12 : vector<2x32xf32>
      %c0_12 = arith.constant 0 : index
      %c0_13 = arith.constant 0 : index
      %14 = vector.load %arg3[%c0_12, %c0_13] : memref<32x2xf32, #tpu.memory_space<vmem>>, vector<32x2xf32>
      %cst_14 = arith.constant dense<0.000000e+00> : vector<2x2xf32>
      %15 = tpu.matmul %13, %14, %cst_14 {dimension_numbers = #tpu.dot_dimension_numbers<[1], [0], [0], [1], [0, 0, 1, 1], [], []>} : vector<2x32xf32>, vector<32x2xf32>, vector<2x2xf32> -> vector<2x2xf32>
      %c0_15 = arith.constant 0 : index
      %c0_16 = arith.constant 0 : index
      %16 = vector.load %arg4[%c0_15, %c0_16] : memref<1x2xf32, #tpu.memory_space<vmem>>, vector<1x2xf32>
      %17 = vector.broadcast %16 : vector<1x2xf32> to vector<2x2xf32>
      %18 = arith.addf %15, %17 : vector<2x2xf32>
      %cst_17 = arith.constant 0.000000e+00 : f32
      %19 = vector.broadcast %cst_17 : f32 to vector<2x2xf32>
      %20 = arith.maximumf %18, %19 : vector<2x2xf32>
      %c0_18 = arith.constant 0 : index
      %c0_19 = arith.constant 0 : index
      %21 = vector.load %arg5[%c0_18, %c0_19] : memref<2x32xf32, #tpu.memory_space<vmem>>, vector<2x32xf32>
      %cst_20 = arith.constant dense<0.000000e+00> : vector<2x32xf32>
      %22 = tpu.matmul %20, %21, %cst_20 {dimension_numbers = #tpu.dot_dimension_numbers<[1], [0], [0], [1], [0, 0, 1, 1], [], []>} : vector<2x2xf32>, vector<2x32xf32>, vector<2x32xf32> -> vector<2x32xf32>
      %c0_21 = arith.constant 0 : index
      %c0_22 = arith.constant 0 : index
      %23 = vector.load %arg6[%c0_21, %c0_22] : memref<1x32xf32, #tpu.memory_space<vmem>>, vector<1x32xf32>
      %24 = vector.broadcast %23 : vector<1x32xf32> to vector<2x32xf32>
      %25 = arith.addf %22, %24 : vector<2x32xf32>
      %26 = arith.negf %25 : vector<2x32xf32>
      %27 = math.exp %26 : vector<2x32xf32>
      %cst_23 = arith.constant 1.000000e+00 : f32
      %28 = vector.broadcast %cst_23 : f32 to vector<2x32xf32>
      %29 = arith.addf %28, %27 : vector<2x32xf32>
      %30 = arith.divf %28, %29 : vector<2x32xf32>
      %c0_24 = arith.constant 0 : index
      %c0_25 = arith.constant 0 : index
      %31 = vector.load %arg7[%c0_24, %c0_25] : memref<2x32xf32, #tpu.memory_space<vmem>>, vector<2x32xf32>
      tpu.vector_store %arg7[%c0_24, %c0_25], %30 {strides = array<i32>} : memref<2x32xf32, #tpu.memory_space<vmem>>, vector<2x32xf32>,
    } else {
    }
    return
  }
  func.func @transform_0(%arg0: i32, %arg1: i32) -> (i32, i32, i32) {
    %c0_i32 = arith.constant 0 : i32
    %c0_i32_0 = arith.constant 0 : i32
    return %arg0, %c0_i32, %arg1 : i32, i32, i32
  }
  func.func @transform_1(%arg0: i32, %arg1: i32) -> (i32, i32) {
    %c0_i32 = arith.constant 0 : i32
    %c0_i32_0 = arith.constant 0 : i32
    %c0_i32_1 = arith.constant 0 : i32
    return %c0_i32, %c0_i32_0 : i32, i32
  }
  func.func @transform_2(%arg0: i32, %arg1: i32) -> (i32, i32) {
    %c0_i32 = arith.constant 0 : i32
    %c0_i32_0 = arith.constant 0 : i32
    %c0_i32_1 = arith.constant 0 : i32
    return %c0_i32, %c0_i32_0 : i32, i32
  }
  func.func @transform_3(%arg0: i32, %arg1: i32) -> (i32, i32) {
    %c0_i32 = arith.constant 0 : i32
    %c0_i32_0 = arith.constant 0 : i32
    %c0_i32_1 = arith.constant 0 : i32
    return %c0_i32, %c0_i32_0 : i32, i32
  }
  func.func @transform_4(%arg0: i32, %arg1: i32) -> (i32, i32) {
    %c0_i32 = arith.constant 0 : i32
    %c0_i32_0 = arith.constant 0 : i32
    %c0_i32_1 = arith.constant 0 : i32
    return %c0_i32, %c0_i32_0 : i32, i32
  }
  func.func @transform_5(%arg0: i32, %arg1: i32) -> (i32, i32) {
    %c0_i32 = arith.constant 0 : i32
    %c0_i32_0 = arith.constant 0 : i32
    return %arg0, %c0_i32 : i32, i32
  }
}

</mosaic_0001>

<llo_original>
// kernel: tpu_custom_call.1
$region0: #{tpu_custom_call.1}
  #allocation0 [shape = 'u32[]', space=smem, size = 0x4, offset = 0x4, fixed_abs, tag = 'smem constant byte address 0x4 - core index']
  #allocation1 [shape = 'u32[144,128]{1,0:T(1,128)}', space=vmem, size = 0x12000, scoped, tag = 'internal scratch']
  #allocation2 [shape = 'f32[2,32]{1,0:T(2,128)}', space=vmem, size = 0x400, scoped, tag = 'scratch operand']
  %s0 = inlined_call_operand.hbm [shape: f32[2,32,64], index: 0, kind: input, shape index: {}]
  %s1 = inlined_call_operand.vmem [shape: f32[32,2], index: 1, kind: input, shape index: {}]
  %s2 = inlined_call_operand.vmem [shape: f32[1,2], index: 2, kind: input, shape index: {}]
  %s3 = inlined_call_operand.vmem [shape: f32[2,32], index: 3, kind: input, shape index: {}]
  %s4 = inlined_call_operand.vmem [shape: f32[1,32], index: 4, kind: input, shape index: {}]
  %s5 = inlined_call_operand.hbm [shape: f32[2,32], index: 5, kind: output, shape index: {}]
  %s6 = sld [smem:[#allocation0]]
  $region42: #{tpu_custom_call.1} parent=0
    _
  %s8 = ssub.s32 1, %s6
  %s9 = scalar_select 0, %s8, %s6
  $region1: #{tpu_custom_call.1} parent=0
    #allocation3 [shape = 'u8[32768]{0}', space=vmem, size = 0x8000, scoped, tag = 'input window, operand 0, single buffered']
    #allocation4 [shape = 's32[1]{0}', space=sflag, size = 0x4, scoped, tag = 'scoped memory for tpu_custom_call.1']
    #allocation5 [shape = 's32[1]{0}', space=sflag, size = 0x4, scoped, tag = 'scoped memory for tpu_custom_call.1']
    #allocation6 [shape = 'u8[1024]{0}', space=vmem, size = 0x400, scoped, tag = 'output window, operand 0, single buffered']
    %10 = vsyncpa [#allocation4], 0
    %11 = vsyncpa [#allocation5], 0
    // Predicated region
    $region2: #{tpu_custom_call.1} parent=1 // pred_check
      _
    $region3: #{tpu_custom_call.1} parent=1 // pred_check_branch
      %13 = sbr.rel (0) target = $region5
    $region4: #{tpu_custom_call.1} parent=1 // pred_region
      %s15 = ssub.s32 1024, 1024
      %16 = vsyncadd [#allocation4], %s15
      %s17 = sshll.u32 [#allocation3], 4
      %s18 = int_to_ptr.vmem [resolvable:$true] %s17
      %23 = dma.hbm_to_vmem [thread:$0]  %s0, 1024, %s18, [#allocation4], 128, 128, 8
    $region5: #{tpu_custom_call.1} parent=1 // pred_fallthru
      _
    // Predicated region
    $region6: #{tpu_custom_call.1} parent=1 // pred_check
      _
    $region7: #{tpu_custom_call.1} parent=1 // pred_check_branch
      %25 = sbr.rel (0) target = $region9
    $region8: #{tpu_custom_call.1} parent=1 // pred_region
      _
    $region9: #{tpu_custom_call.1} parent=1 // pred_fallthru
      _
    // Predicated region
    $region10: #{tpu_custom_call.1} parent=1 // pred_check
      _
    $region11: #{tpu_custom_call.1} parent=1 // pred_check_branch
      %27 = sbr.rel (0) target = $region13
    $region12: #{tpu_custom_call.1} parent=1 // pred_region
      _
    $region13: #{tpu_custom_call.1} parent=1 // pred_fallthru
      _
    // Predicated region
    $region14: #{tpu_custom_call.1} parent=1 // pred_check
      _
    $region15: #{tpu_custom_call.1} parent=1 // pred_check_branch
      %29 = sbr.rel (0) target = $region17
    $region16: #{tpu_custom_call.1} parent=1 // pred_region
      _
    $region17: #{tpu_custom_call.1} parent=1 // pred_fallthru
      _
    // Predicated region
    $region18: #{tpu_custom_call.1} parent=1 // pred_check
      _
    $region19: #{tpu_custom_call.1} parent=1 // pred_check_branch
      %31 = sbr.rel (0) target = $region21
    $region20: #{tpu_custom_call.1} parent=1 // pred_region
      _
    $region21: #{tpu_custom_call.1} parent=1 // pred_fallthru
      _
    // Predicated region
    $region22: #{tpu_custom_call.1} parent=1 // pred_check
      _
    $region23: #{tpu_custom_call.1} parent=1 // pred_check_branch
      %33 = sbr.rel (0) target = $region25
    $region24: #{tpu_custom_call.1} parent=1 // pred_region
      %34 = dma.done [#allocation4], 1024
    $region25: #{tpu_custom_call.1} parent=1 // pred_fallthru
      _
    %p35 = scmp.eq.s32.totalorder 0, 0
    // Predicated region
    $region26: #{tpu_custom_call.1} parent=1 // pred_check
      %p36 = pneg %p35
    $region27: #{tpu_custom_call.1} parent=1 // pred_check_branch
      %38 = sbr.rel (%p36) target = $region29
    $region28: #{tpu_custom_call.1} parent=1 // pred_region
      %vm39 = vcmask 254976
      %40 = vst.msk [vmem:[#allocation2] sm:$0x3] %vm39, 0.0
    $region29: #{tpu_custom_call.1} parent=1 // pred_fallthru
      _
    %v41 = vld [vmem:[#allocation3] sm:$0xff]
    %v42 = vld [vmem:[#allocation3 + $0x8] sm:$0xff]
    %v43 = vld [vmem:[#allocation3 + $0x10] sm:$0xff]
    %v44 = vld [vmem:[#allocation3 + $0x18] sm:$0xff]
    %v45 = vld [vmem:[#allocation3 + $0x20] sm:$0xff]
    %v46 = vld [vmem:[#allocation3 + $0x28] sm:$0xff]
    %v47 = vld [vmem:[#allocation3 + $0x30] sm:$0xff]
    %v48 = vld [vmem:[#allocation3 + $0x38] sm:$0xff]
    %v49 = vld [vmem:[#allocation2] sm:$0x3]
    %vm50 = vcmask 523264
    %v51 = vsel %vm50, %v41, 0.0
    %52 = vadd.xlane.f32.xlu0 %v51
    %v53 = vpop.xlane.xlu0 %52
    %v54 = vsel %vm50, %v42, 0.0
    %55 = vadd.xlane.f32.xlu0 %v54
    %v56 = vpop.xlane.xlu0 %55
    %v57 = vsel %vm50, %v43, 0.0
    %58 = vadd.xlane.f32.xlu0 %v57
    %v59 = vpop.xlane.xlu0 %58
    %v60 = vsel %vm50, %v44, 0.0
    %61 = vadd.xlane.f32.xlu0 %v60
    %v62 = vpop.xlane.xlu0 %61
    %v63 = vsel %vm50, %v45, 0.0
    %64 = vadd.xlane.f32.xlu0 %v63
    %v65 = vpop.xlane.xlu0 %64
    %v66 = vsel %vm50, %v46, 0.0
    %67 = vadd.xlane.f32.xlu0 %v66
    %v68 = vpop.xlane.xlu0 %67
    %v69 = vsel %vm50, %v47, 0.0
    %70 = vadd.xlane.f32.xlu0 %v69
    %v71 = vpop.xlane.xlu0 %70
    %v72 = vsel %vm50, %v48, 0.0
    %73 = vadd.xlane.f32.xlu0 %v72
    %v74 = vpop.xlane.xlu0 %73
    %v83 = vlaneseq
    %v84 = vand.u32 %v83, 127
    %v85 = vlaneseq
    %v86 = vshrl.u32 %v85, 7
    %v87 = vsub.s32 %v84, %v86
    %v88 = vrot.slane %v53, %v87
    %v89 = vadd.s32 %v84, 4294967288
    %v90 = vlaneseq
    %v91 = vshrl.u32 %v90, 7
    %v92 = vsub.s32 %v89, %v91
    %v93 = vrot.slane %v56, %v92
    %vm94 = vcmask 130112
    %v95 = vsel %vm94, %v93, %v88
    %v96 = vadd.s32 %v84, 4294967280
    %v97 = vlaneseq
    %v98 = vshrl.u32 %v97, 7
    %v99 = vsub.s32 %v96, %v98
    %v100 = vrot.slane %v59, %v99
    %vm101 = vcmask 195712
    %v102 = vsel %vm101, %v100, %v95
    %v103 = vadd.s32 %v84, 4294967272
    %v104 = vlaneseq
    %v105 = vshrl.u32 %v104, 7
    %v106 = vsub.s32 %v103, %v105
    %v107 = vrot.slane %v62, %v106
    %vm108 = vcmask 261312
    %v109 = vsel %vm108, %v107, %v102
    %v110 = vlaneseq
    %v111 = vshrl.u32 %v110, 7
    %v112 = vsub.s32 %v84, %v111
    %v113 = vrot.slane %v65, %v112
    %v114 = vlaneseq
    %v115 = vshrl.u32 %v114, 7
    %v116 = vsub.s32 %v89, %v115
    %v117 = vrot.slane %v68, %v116
    %v118 = vsel %vm94, %v117, %v113
    %v119 = vlaneseq
    %v120 = vshrl.u32 %v119, 7
    %v121 = vsub.s32 %v96, %v120
    %v122 = vrot.slane %v71, %v121
    %v123 = vsel %vm101, %v122, %v118
    %v124 = vlaneseq
    %v125 = vshrl.u32 %v124, 7
    %v126 = vsub.s32 %v103, %v125
    %v127 = vrot.slane %v74, %v126
    %v128 = vsel %vm108, %v127, %v123
    %vm129 = vcmask 1041409
    %v130 = vsel %vm129, %v128, %v109
    %v132 = vadd.f32 %v49, %v130
    %vm133 = vcmask 254976
    %134 = vst.msk [vmem:[#allocation2] sm:$0x3] %vm133, %v132
    // Predicated region
    $region30: #{tpu_custom_call.1} parent=1 // pred_check
      %p135 = pneg %p35
    $region31: #{tpu_custom_call.1} parent=1 // pred_check_branch
      %137 = sbr.rel (%p135) target = $region33
    $region32: #{tpu_custom_call.1} parent=1 // pred_region
      %v138 = vld [vmem:[#allocation2] sm:$0x3]
      %v139 = vmul.f32 %v138, 0.015625
      %v140 = vld [vmem:[%s1] sm:$0xff]
      %v141 = vld [vmem:[%s1 + $0x8] sm:$0xff]
      %v142 = vld [vmem:[%s1 + $0x10] sm:$0xff]
      %v143 = vld [vmem:[%s1 + $0x18] sm:$0xff]
      %v144 = vld [vmem:[%s2] sm:$0x1]
      %v146 = vlaneseq
      %v147 = vshrl.u32 %v146, 7
      %v148 = vsub.s32 0, %v147
      %v149 = vrot.slane %v144, %v148
      %vm151 = vcmask 261120
      %v153 = vsel %vm151, %v139, 0
      %155 = vmatprep.subr.mxu0 0.0
      %156 = vmatpush1.msra.mxu0 %v140
      %157 = vmatprep.subr.mxu0 0.0
      %158 = vmatpush1.msra.mxu0 %v141
      %159 = vmatprep.subr.mxu0 0.0
      %160 = vmatpush1.msra.mxu0 %v142
      %161 = vmatprep.subr.mxu0 0.0
      %162 = vmatpush1.msra.mxu0 %v143
      %163 = vmatprep.subr.mxu0 0.0
      %164 = vmatpush1.msra.mxu0 0.0
      %165 = vmatprep.subr.mxu0 0.0
      %166 = vmatpush1.msra.mxu0 0.0
      %167 = vmatprep.subr.mxu0 0.0
      %168 = vmatpush1.msra.mxu0 0.0
      %169 = vmatprep.subr.mxu0 0.0
      %170 = vmatpush1.msra.mxu0 0.0
      %171 = vmatprep.subr.mxu0 0.0
      %172 = vmatpush1.msra.mxu0 0.0
      %173 = vmatprep.subr.mxu0 0.0
      %174 = vmatpush1.msra.mxu0 0.0
      %175 = vmatprep.subr.mxu0 0.0
      %176 = vmatpush1.msra.mxu0 0.0
      %177 = vmatprep.subr.mxu0 0.0
      %178 = vmatpush1.msra.mxu0 0.0
      %179 = vmatprep.subr.mxu0 0.0
      %180 = vmatpush1.msra.mxu0 0.0
      %181 = vmatprep.subr.mxu0 0.0
      %182 = vmatpush1.msra.mxu0 0.0
      %183 = vmatprep.subr.mxu0 0.0
      %184 = vmatpush1.msra.mxu0 0.0
      %185 = vmatprep.subr.mxu0 0.0
      %186 = vmatpush1.msra.mxu0 0.0
      %187 = vmatprep.subr.mxu0 0.0
      %188 = vmatpush1.msra.mxu0 0.0
      %189 = vmatprep.subr.mxu0 0.0
      %190 = vmatpush1.msra.mxu0 0.0
      %191 = vmatprep.subr.mxu0 0.0
      %192 = vmatpush1.msra.mxu0 0.0
      %193 = vmatprep.subr.mxu0 0.0
      %194 = vmatpush1.msra.mxu0 0.0
      %195 = vmatprep.subr.mxu0 0.0
      %196 = vmatpush1.msra.mxu0 0.0
      %197 = vmatprep.subr.mxu0 0.0
      %198 = vmatpush1.msra.mxu0 0.0
      %199 = vmatprep.subr.mxu0 0.0
      %200 = vmatpush1.msra.mxu0 0.0
      %201 = vmatprep.subr.mxu0 0.0
      %202 = vmatpush1.msra.mxu0 0.0
      %203 = vmatprep.subr.mxu0 0.0
      %204 = vmatpush1.msra.mxu0 0.0
      %205 = vmatprep.subr.mxu0 0.0
      %206 = vmatpush1.msra.mxu0 0.0
      %207 = vmatprep.subr.mxu0 0.0
      %208 = vmatpush1.msra.mxu0 0.0
      %209 = vmatprep.subr.mxu0 0.0
      %210 = vmatpush1.msra.mxu0 0.0
      %211 = vmatprep.subr.mxu0 0.0
      %212 = vmatpush1.msra.mxu0 0.0
      %213 = vmatprep.subr.mxu0 0.0
      %214 = vmatpush1.msra.mxu0 0.0
      %215 = vmatprep.subr.mxu0 0.0
      %216 = vmatpush1.msra.mxu0 0.0
      %217 = vmatprep.subr.mxu0 0.0
      %218 = vmatpush1.msra.mxu0 0.0
      %219 = vmatprep.mubr.f32.mxu0 0.0
      %220 = vmatmul.mubr.f32.gmra.mrb[0].mxu0 %v153
      %v221 = vpop.f32.mrb[0].mxu0
      %v222 = vadd.f32 %v149, %v221
      %v223 = vpop.f32.mrb[0].mxu0
      %224 = vdwg.mxu0
      %v225 = vmax.f32 %v222, 0.0
      %v226 = vld [vmem:[%s3] sm:$0x3]
      %v227 = vld [vmem:[%s4] sm:$0x1]
      %v229 = vlaneseq
      %v230 = vshrl.u32 %v229, 7
      %v231 = vsub.s32 0, %v230
      %v232 = vrot.slane %v227, %v231
      %vm234 = vcmask 15360
      %v236 = vsel %vm234, %v225, 0
      %vm238 = vcmask 1041408
      %v240 = vsel %vm238, %v226, 0
      %242 = vmatprep.subr.mxu0 0.0
      %243 = vmatpush1.msra.mxu0 %v240
      %244 = vmatprep.subr.mxu0 0.0
      %245 = vmatpush1.msra.mxu0 0.0
      %246 = vmatprep.subr.mxu0 0.0
      %247 = vmatpush1.msra.mxu0 0.0
      %248 = vmatprep.subr.mxu0 0.0
      %249 = vmatpush1.msra.mxu0 0.0
      %250 = vmatprep.subr.mxu0 0.0
      %251 = vmatpush1.msra.mxu0 0.0
      %252 = vmatprep.subr.mxu0 0.0
      %253 = vmatpush1.msra.mxu0 0.0
      %254 = vmatprep.subr.mxu0 0.0
      %255 = vmatpush1.msra.mxu0 0.0
      %256 = vmatprep.subr.mxu0 0.0
      %257 = vmatpush1.msra.mxu0 0.0
      %258 = vmatprep.subr.mxu0 0.0
      %259 = vmatpush1.msra.mxu0 0.0
      %260 = vmatprep.subr.mxu0 0.0
      %261 = vmatpush1.msra.mxu0 0.0
      %262 = vmatprep.subr.mxu0 0.0
      %263 = vmatpush1.msra.mxu0 0.0
      %264 = vmatprep.subr.mxu0 0.0
      %265 = vmatpush1.msra.mxu0 0.0
      %266 = vmatprep.subr.mxu0 0.0
      %267 = vmatpush1.msra.mxu0 0.0
      %268 = vmatprep.subr.mxu0 0.0
      %269 = vmatpush1.msra.mxu0 0.0
      %270 = vmatprep.subr.mxu0 0.0
      %271 = vmatpush1.msra.mxu0 0.0
      %272 = vmatprep.subr.mxu0 0.0
      %273 = vmatpush1.msra.mxu0 0.0
      %274 = vmatprep.subr.mxu0 0.0
      %275 = vmatpush1.msra.mxu0 0.0
      %276 = vmatprep.subr.mxu0 0.0
      %277 = vmatpush1.msra.mxu0 0.0
      %278 = vmatprep.subr.mxu0 0.0
      %279 = vmatpush1.msra.mxu0 0.0
      %280 = vmatprep.subr.mxu0 0.0
      %281 = vmatpush1.msra.mxu0 0.0
      %282 = vmatprep.subr.mxu0 0.0
      %283 = vmatpush1.msra.mxu0 0.0
      %284 = vmatprep.subr.mxu0 0.0
      %285 = vmatpush1.msra.mxu0 0.0
      %286 = vmatprep.subr.mxu0 0.0
      %287 = vmatpush1.msra.mxu0 0.0
      %288 = vmatprep.subr.mxu0 0.0
      %289 = vmatpush1.msra.mxu0 0.0
      %290 = vmatprep.subr.mxu0 0.0
      %291 = vmatpush1.msra.mxu0 0.0
      %292 = vmatprep.subr.mxu0 0.0
      %293 = vmatpush1.msra.mxu0 0.0
      %294 = vmatprep.subr.mxu0 0.0
      %295 = vmatpush1.msra.mxu0 0.0
      %296 = vmatprep.subr.mxu0 0.0
      %297 = vmatpush1.msra.mxu0 0.0
      %298 = vmatprep.subr.mxu0 0.0
      %299 = vmatpush1.msra.mxu0 0.0
      %300 = vmatprep.subr.mxu0 0.0
      %301 = vmatpush1.msra.mxu0 0.0
      %302 = vmatprep.subr.mxu0 0.0
      %303 = vmatpush1.msra.mxu0 0.0
      %304 = vmatprep.subr.mxu0 0.0
      %305 = vmatpush1.msra.mxu0 0.0
      %306 = vmatprep.mubr.f32.mxu0 0.0
      %307 = vmatmul.mubr.f32.gmra.mrb[0].mxu0 %v236
      %v308 = vpop.f32.mrb[0].mxu0
      %v309 = vadd.f32 %v232, %v308
      %v310 = vpop.f32.mrb[0].mxu0
      %311 = vdwg.mxu0
      %v312 = vxor.u32 %v309, 2147483648
      %v313 = vmul.f32 %v312, 1.442695
      %v314 = vpow.pop %v313
      %v315 = vadd.f32 %v314, 1.0
      %v316 = vrcp.pop %v315
      %v317 = vmul.f32 1.0, %v316
      %318 = vst.msk [vmem:[#allocation6] sm:$0x3] %vm133, %v317
    $region33: #{tpu_custom_call.1} parent=1 // pred_fallthru
      _
    // Predicated region
    $region34: #{tpu_custom_call.1} parent=1 // pred_check
      _
    $region35: #{tpu_custom_call.1} parent=1 // pred_check_branch
      %320 = sbr.rel (0) target = $region37
    $region36: #{tpu_custom_call.1} parent=1 // pred_region
      %s322 = ssub.s32 32, 32
      %323 = vsyncadd [#allocation5], %s322
      %s325 = sshll.u32 [#allocation6], 4
      %s326 = int_to_ptr.vmem [resolvable:$true] %s325
      %328 = dma.vmem_to_hbm [thread:$0]  %s326, 32, %s5, [#allocation5]
    $region37: #{tpu_custom_call.1} parent=1 // pred_fallthru
      _
    // Predicated region
    $region38: #{tpu_custom_call.1} parent=1 // pred_check
      _
    $region39: #{tpu_custom_call.1} parent=1 // pred_check_branch
      %330 = sbr.rel (0) target = $region41
    $region40: #{tpu_custom_call.1} parent=1 // pred_region
      %331 = dma.done [#allocation5], 32
    $region41: #{tpu_custom_call.1} parent=1 // pred_fallthru
      _
    %332 = vsyncpa [#allocation4], 1
    %333 = vsyncpa [#allocation5], 1

</llo_original>
